<compile_context>
chip_gen: v7x
topology: tpu7x:2x2x1
jax: 0.10.0
libtpu: 0.0.40
codegen_flags: <defaults>
</compile_context>

<pallas_src>
import math

import jax
import jax.numpy as jnp
from jax.experimental import pallas as pl
from jax.experimental.pallas import tpu as pltpu


def _make_kron_mlp_kernel(dd_pad, l_pad):
    """Kernel over 2 VMEM-resident inputs: coeff activations + weight slab."""

    def kernel(coeff_ref, slab_ref, out_ref):
        f32 = jnp.float32
        coeff = coeff_ref[...]                                   # (NM, DDpad)
        # Static, 8-aligned row slices of the packed weight slab.
        wf = slab_ref[0:dd_pad, :]                               # (DDpad, L)   Kron weight
        wlin = slab_ref[dd_pad:dd_pad + l_pad, :]                # (L, L)       head weight^T
        b = slab_ref[dd_pad + l_pad:dd_pad + l_pad + 1, :]       # (1, L)       head bias

        # Kronecker feature build as a single MXU contraction (lane-dense in W0):
        #   feat[r, w] = sum_{d,e} x[n,d]*y[m,e]*first[w,d,e],  r = n*M + m
        feat = jnp.dot(coeff, wf, preferred_element_type=f32)    # (NM, L)

        # Depth=1 MLP head: ReLU -> Linear(+bias) -> Sigmoid (lane-padded OUT;
        # padded columns give sigmoid(0)=0.5 and are sliced away by the wrapper).
        h = jnp.maximum(feat, 0.0)
        o = jnp.dot(h, wlin, preferred_element_type=f32) + b     # (NM, L)
        out_ref[...] = 1.0 / (1.0 + jnp.exp(-o))

    return kernel


def make_kron_mlp(params):
    """Pack Kron_MLP(depth=1, bias=True, use_sigmoid=True) params once and
    return a jitted forward(x, y=None) -> (N*M, output_dim)."""
    first = jnp.asarray(params["first"], jnp.float32)   # (W0, D, D)
    w_lin = jnp.asarray(params["w_lin"], jnp.float32)   # (OUT, W0) torch Linear layout
    b_lin = jnp.asarray(params["b_lin"], jnp.float32)   # (OUT,)

    w0, d, _ = first.shape
    out_dim = w_lin.shape[0]
    dd = d * d
    dd_pad = max(8, ((dd + 7) // 8) * 8)                       # 8-aligned contraction dim
    l_pad = ((max(w0, out_dim) + 127) // 128) * 128            # common lane width

    # --- one-time weight repacking into a single lane-padded slab ------------
    #   rows [0, dd)                : wf[d*D+e, w] = first[w, d, e]  (cols >= W0 zero)
    #   rows [dd_pad, dd_pad+W0)    : w_lin.T                        (cols >= OUT zero)
    #   row   dd_pad + l_pad        : b_lin                          (cols >= OUT zero)
    slab = jnp.zeros((dd_pad + l_pad + 1, l_pad), jnp.float32)
    slab = slab.at[:dd, :w0].set(first.reshape(w0, dd).T)
    slab = slab.at[dd_pad:dd_pad + w0, :out_dim].set(w_lin.T)
    slab = slab.at[dd_pad + l_pad, :out_dim].set(b_lin)
    slab = jax.block_until_ready(slab)

    kernel = _make_kron_mlp_kernel(dd_pad, l_pad)
    vmem = pl.BlockSpec(memory_space=pltpu.MemorySpace.VMEM)

    @jax.jit
    def forward(x, y=None):
        if y is None:
            y = x
        xf = jnp.asarray(x, jnp.float32)
        yf = jnp.asarray(y, jnp.float32)
        n, m = xf.shape[0], yf.shape[0]
        nm = n * m

        # coeff[n*M+m, d*D+e] = x[n,d] * y[m,e]  (fuses under jit; folds the
        # old repeat/tile pair into a single kernel input).
        coeff = (xf[:, None, :, None] * yf[None, :, None, :]).reshape(nm, dd)
        coeff = jnp.pad(coeff, ((0, 0), (0, dd_pad - dd)))

        cost = pl.CostEstimate(
            flops=2 * nm * dd_pad * l_pad + 2 * nm * l_pad * l_pad + 4 * nm * l_pad,
            transcendentals=nm * l_pad,
            bytes_accessed=4 * (coeff.size + slab.size + nm * l_pad),
        )
        out = pl.pallas_call(
            kernel,
            out_shape=jax.ShapeDtypeStruct((nm, l_pad), jnp.float32),
            in_specs=[vmem, vmem],
            out_specs=vmem,
            cost_estimate=cost,
        )(coeff, slab)
        return out[:, :out_dim]

    return forward


def _reference(x, params, y=None):
    """Plain-JAX replica of the PyTorch forward (for verification)."""
    if y is None:
        y = x
    first, w_lin, b_lin = params["first"], params["w_lin"], params["b_lin"]
    w0 = first.shape[0]
    r1 = jnp.einsum('nd,wde->wne', x, first)     # x @ first.weight
    r2 = jnp.einsum('wne,me->wnm', r1, y)        # @ y.transpose(0, 1)
    f = r2.reshape(w0, -1).T                     # flatten(1,2).transpose(0,1)
    h = jnp.maximum(f, 0.0)                      # ReLU
    o = h @ w_lin.T + b_lin                      # Linear
    return jax.nn.sigmoid(o)                     # Sigmoid


if __name__ == "__main__":
    D = 2        # input_dim (module default)
    N, M = 8, 8  # points in x / y  -> N*M = 64 output rows
    W0 = 32      # width0 (depth=1 keeps width0)
    OUT = 3      # output_dim (module default)

    key = jax.random.PRNGKey(0)
    kf, kw, kb, kx, ky = jax.random.split(key, 5)
    bound0 = 1.0 / math.sqrt(W0)
    params = {
        # first.weight = 2/sqrt(W0) * rand(W0, D, D) - 1/sqrt(W0)
        "first": jax.random.uniform(kf, (W0, D, D), jnp.float32, -bound0, bound0),
        "w_lin": jax.random.uniform(kw, (OUT, W0), jnp.float32, -bound0, bound0),
        "b_lin": jax.random.uniform(kb, (OUT,), jnp.float32, -bound0, bound0),
    }
    x = jax.random.normal(kx, (N, D), jnp.float32)
    y = jax.random.normal(ky, (M, D), jnp.float32)

    forward = make_kron_mlp(params)
    out = jax.block_until_ready(forward(x, y))

    ref = _reference(x, params, y=y)
    assert out.shape == (N * M, OUT), out.shape
    max_err = float(jnp.max(jnp.abs(out - ref)))
    assert jnp.allclose(out, ref, rtol=1e-5, atol=1e-5), max_err
    print("KERNEL_OK")
</pallas_src>

<mosaic_0001>
module attributes {stable_mosaic.version = 11 : i64} {
  func.func @kernel(%arg0: memref<64x8xf32, #tpu.memory_space<vmem>>, %arg1: memref<137x128xf32, #tpu.memory_space<vmem>>, %arg2: memref<64x128xf32, #tpu.memory_space<vmem>>) attributes {dimension_semantics = [], scalar_prefetch = 0 : i64, scratch_operands = 0 : i64, tpu.core_type = #tpu.core_type<tc>} {
    %c0 = arith.constant 0 : index
    %c0_0 = arith.constant 0 : index
    %0 = vector.load %arg0[%c0, %c0_0] : memref<64x8xf32, #tpu.memory_space<vmem>>, vector<64x8xf32>
    %c0_1 = arith.constant 0 : index
    %c0_2 = arith.constant 0 : index
    %1 = vector.load %arg1[%c0_1, %c0_2] : memref<137x128xf32, #tpu.memory_space<vmem>>, vector<8x128xf32>
    %c8 = arith.constant 8 : index
    %c0_3 = arith.constant 0 : index
    %2 = vector.load %arg1[%c8, %c0_3] : memref<137x128xf32, #tpu.memory_space<vmem>>, vector<128x128xf32>
    %c136 = arith.constant 136 : index
    %c0_4 = arith.constant 0 : index
    %3 = vector.load %arg1[%c136, %c0_4] : memref<137x128xf32, #tpu.memory_space<vmem>>, vector<1x128xf32>
    %cst = arith.constant dense<0.000000e+00> : vector<64x128xf32>
    %4 = tpu.matmul %0, %1, %cst {dimension_numbers = #tpu.dot_dimension_numbers<[1], [0], [0], [1], [0, 0, 1, 1], [], []>} : vector<64x8xf32>, vector<8x128xf32>, vector<64x128xf32> -> vector<64x128xf32>
    %cst_5 = arith.constant 0.000000e+00 : f32
    %5 = vector.broadcast %cst_5 : f32 to vector<64x128xf32>
    %6 = arith.maximumf %4, %5 : vector<64x128xf32>
    %cst_6 = arith.constant dense<0.000000e+00> : vector<64x128xf32>
    %7 = tpu.matmul %6, %2, %cst_6 {dimension_numbers = #tpu.dot_dimension_numbers<[1], [0], [0], [1], [0, 0, 1, 1], [], []>} : vector<64x128xf32>, vector<128x128xf32>, vector<64x128xf32> -> vector<64x128xf32>
    %8 = vector.broadcast %3 : vector<1x128xf32> to vector<64x128xf32>
    %9 = arith.addf %7, %8 : vector<64x128xf32>
    %cst_7 = arith.constant 0.000000e+00 : f32
    %10 = vector.broadcast %cst_7 : f32 to vector<64x128xf32>
    %11 = arith.subf %10, %9 : vector<64x128xf32>
    %12 = math.exp %11 : vector<64x128xf32>
    %cst_8 = arith.constant 1.000000e+00 : f32
    %13 = vector.broadcast %cst_8 : f32 to vector<64x128xf32>
    %14 = arith.addf %13, %12 : vector<64x128xf32>
    %cst_9 = arith.constant 1.000000e+00 : f32
    %15 = vector.broadcast %cst_9 : f32 to vector<64x128xf32>
    %16 = arith.divf %15, %14 : vector<64x128xf32>
    %c0_10 = arith.constant 0 : index
    %c0_11 = arith.constant 0 : index
    %17 = vector.load %arg2[%c0_10, %c0_11] : memref<64x128xf32, #tpu.memory_space<vmem>>, vector<64x128xf32>
    tpu.vector_store %arg2[%c0_10, %c0_11], %16 {strides = array<i32>} : memref<64x128xf32, #tpu.memory_space<vmem>>, vector<64x128xf32>,
    return
  }
}

</mosaic_0001>

<llo_original>
// kernel: forward.1
$region0: #{forward.1}
  #allocation0 [shape = 'u32[]', space=smem, size = 0x4, offset = 0x4, fixed_abs, tag = 'smem constant byte address 0x4 - core index']
  #allocation1 [shape = 'u32[144,128]{1,0:T(1,128)}', space=vmem, size = 0x12000, scoped, tag = 'internal scratch']
  %s0 = inlined_call_operand.vmem [shape: f32[64,8], index: 0, kind: input, shape index: {}]
  %s1 = inlined_call_operand.vmem [shape: f32[137,128], index: 1, kind: input, shape index: {}]
  %s2 = inlined_call_operand.vmem [shape: f32[64,128], index: 2, kind: output, shape index: {}]
  %s3 = sld [smem:[#allocation0]]
  $region18: #{forward.1} parent=0
    _
  %s5 = ssub.s32 1, %s3
  %s6 = scalar_select 0, %s5, %s3
  // Predicated region
  $region2: #{forward.1} parent=0 // pred_check
    _
  $region3: #{forward.1} parent=0 // pred_check_branch
    %8 = sbr.rel (0) target = $region5
  $region4: #{forward.1} parent=0 // pred_region
    _
  $region5: #{forward.1} parent=0 // pred_fallthru
    _
  // Predicated region
  $region6: #{forward.1} parent=0 // pred_check
    _
  $region7: #{forward.1} parent=0 // pred_check_branch
    %10 = sbr.rel (0) target = $region9
  $region8: #{forward.1} parent=0 // pred_region
    _
  $region9: #{forward.1} parent=0 // pred_fallthru
    _
  %v11 = vld [vmem:[%s0] sm:$0xff]
  %v12 = vld [vmem:[%s0 + $0x8] sm:$0xff]
  %v13 = vld [vmem:[%s0 + $0x10] sm:$0xff]
  %v14 = vld [vmem:[%s0 + $0x18] sm:$0xff]
  %v15 = vld [vmem:[%s0 + $0x20] sm:$0xff]
  %v16 = vld [vmem:[%s0 + $0x28] sm:$0xff]
  %v17 = vld [vmem:[%s0 + $0x30] sm:$0xff]
  %v18 = vld [vmem:[%s0 + $0x38] sm:$0xff]
  %v19 = vld [vmem:[%s1] sm:$0xff]
  %v20 = vld [vmem:[%s1 + $0x8] sm:$0xff]
  %v21 = vld [vmem:[%s1 + $0x10] sm:$0xff]
  %v22 = vld [vmem:[%s1 + $0x18] sm:$0xff]
  %v23 = vld [vmem:[%s1 + $0x20] sm:$0xff]
  %v24 = vld [vmem:[%s1 + $0x28] sm:$0xff]
  %v25 = vld [vmem:[%s1 + $0x30] sm:$0xff]
  %v26 = vld [vmem:[%s1 + $0x38] sm:$0xff]
  %v27 = vld [vmem:[%s1 + $0x40] sm:$0xff]
  %v28 = vld [vmem:[%s1 + $0x48] sm:$0xff]
  %v29 = vld [vmem:[%s1 + $0x50] sm:$0xff]
  %v30 = vld [vmem:[%s1 + $0x58] sm:$0xff]
  %v31 = vld [vmem:[%s1 + $0x60] sm:$0xff]
  %v32 = vld [vmem:[%s1 + $0x68] sm:$0xff]
  %v33 = vld [vmem:[%s1 + $0x70] sm:$0xff]
  %v34 = vld [vmem:[%s1 + $0x78] sm:$0xff]
  %v35 = vld [vmem:[%s1 + $0x80] sm:$0xff]
  %v36 = vld [vmem:[%s1 + $0x88] sm:$0x1]
  %vm37 = vcmask 64512
  %v39 = vsel %vm37, %v11, 0
  %v42 = vsel %vm37, %v12, 0
  %v45 = vsel %vm37, %v13, 0
  %v48 = vsel %vm37, %v14, 0
  %v51 = vsel %vm37, %v15, 0
  %v54 = vsel %vm37, %v16, 0
  %v57 = vsel %vm37, %v17, 0
  %v60 = vsel %vm37, %v18, 0
  %62 = vmatprep.subr.mxu0 0.0
  %63 = vmatpush1.msra.mxu0 %v19
  %64 = vmatprep.subr.mxu0 0.0
  %65 = vmatpush1.msra.mxu0 0.0
  %66 = vmatprep.subr.mxu0 0.0
  %67 = vmatpush1.msra.mxu0 0.0
  %68 = vmatprep.subr.mxu0 0.0
  %69 = vmatpush1.msra.mxu0 0.0
  %70 = vmatprep.subr.mxu0 0.0
  %71 = vmatpush1.msra.mxu0 0.0
  %72 = vmatprep.subr.mxu0 0.0
  %73 = vmatpush1.msra.mxu0 0.0
  %74 = vmatprep.subr.mxu0 0.0
  %75 = vmatpush1.msra.mxu0 0.0
  %76 = vmatprep.subr.mxu0 0.0
  %77 = vmatpush1.msra.mxu0 0.0
  %78 = vmatprep.subr.mxu0 0.0
  %79 = vmatpush1.msra.mxu0 0.0
  %80 = vmatprep.subr.mxu0 0.0
  %81 = vmatpush1.msra.mxu0 0.0
  %82 = vmatprep.subr.mxu0 0.0
  %83 = vmatpush1.msra.mxu0 0.0
  %84 = vmatprep.subr.mxu0 0.0
  %85 = vmatpush1.msra.mxu0 0.0
  %86 = vmatprep.subr.mxu0 0.0
  %87 = vmatpush1.msra.mxu0 0.0
  %88 = vmatprep.subr.mxu0 0.0
  %89 = vmatpush1.msra.mxu0 0.0
  %90 = vmatprep.subr.mxu0 0.0
  %91 = vmatpush1.msra.mxu0 0.0
  %92 = vmatprep.subr.mxu0 0.0
  %93 = vmatpush1.msra.mxu0 0.0
  %94 = vmatprep.subr.mxu0 0.0
  %95 = vmatpush1.msra.mxu0 0.0
  %96 = vmatprep.subr.mxu0 0.0
  %97 = vmatpush1.msra.mxu0 0.0
  %98 = vmatprep.subr.mxu0 0.0
  %99 = vmatpush1.msra.mxu0 0.0
  %100 = vmatprep.subr.mxu0 0.0
  %101 = vmatpush1.msra.mxu0 0.0
  %102 = vmatprep.subr.mxu0 0.0
  %103 = vmatpush1.msra.mxu0 0.0
  %104 = vmatprep.subr.mxu0 0.0
  %105 = vmatpush1.msra.mxu0 0.0
  %106 = vmatprep.subr.mxu0 0.0
  %107 = vmatpush1.msra.mxu0 0.0
  %108 = vmatprep.subr.mxu0 0.0
  %109 = vmatpush1.msra.mxu0 0.0
  %110 = vmatprep.subr.mxu0 0.0
  %111 = vmatpush1.msra.mxu0 0.0
  %112 = vmatprep.subr.mxu0 0.0
  %113 = vmatpush1.msra.mxu0 0.0
  %114 = vmatprep.subr.mxu0 0.0
  %115 = vmatpush1.msra.mxu0 0.0
  %116 = vmatprep.subr.mxu0 0.0
  %117 = vmatpush1.msra.mxu0 0.0
  %118 = vmatprep.subr.mxu0 0.0
  %119 = vmatpush1.msra.mxu0 0.0
  %120 = vmatprep.subr.mxu0 0.0
  %121 = vmatpush1.msra.mxu0 0.0
  %122 = vmatprep.subr.mxu0 0.0
  %123 = vmatpush1.msra.mxu0 0.0
  %124 = vmatprep.subr.mxu0 0.0
  %125 = vmatpush1.msra.mxu0 0.0
  %126 = vmatprep.mubr.f32.mxu0 0.0
  %127 = vmatmul.mubr.f32.gmra.mrb[0].mxu0 %v39
  %v128 = vpop.f32.mrb[0].mxu0
  %v129 = vadd.f32 0.0, %v128
  %v130 = vpop.f32.mrb[0].mxu0
  %131 = vmatprep.mubr.f32.mxu0 0.0
  %132 = vmatmul.mubr.f32.gmra.mrb[0].mxu0 %v42
  %v133 = vpop.f32.mrb[0].mxu0
  %v134 = vadd.f32 0.0, %v133
  %v135 = vpop.f32.mrb[0].mxu0
  %136 = vmatprep.mubr.f32.mxu0 0.0
  %137 = vmatmul.mubr.f32.gmra.mrb[0].mxu0 %v45
  %v138 = vpop.f32.mrb[0].mxu0
  %v139 = vadd.f32 0.0, %v138
  %v140 = vpop.f32.mrb[0].mxu0
  %141 = vmatprep.mubr.f32.mxu0 0.0
  %142 = vmatmul.mubr.f32.gmra.mrb[0].mxu0 %v48
  %v143 = vpop.f32.mrb[0].mxu0
  %v144 = vadd.f32 0.0, %v143
  %v145 = vpop.f32.mrb[0].mxu0
  %146 = vmatprep.mubr.f32.mxu0 0.0
  %147 = vmatmul.mubr.f32.gmra.mrb[0].mxu0 %v51
  %v148 = vpop.f32.mrb[0].mxu0
  %v149 = vadd.f32 0.0, %v148
  %v150 = vpop.f32.mrb[0].mxu0
  %151 = vmatprep.mubr.f32.mxu0 0.0
  %152 = vmatmul.mubr.f32.gmra.mrb[0].mxu0 %v54
  %v153 = vpop.f32.mrb[0].mxu0
  %v154 = vadd.f32 0.0, %v153
  %v155 = vpop.f32.mrb[0].mxu0
  %156 = vmatprep.mubr.f32.mxu0 0.0
  %157 = vmatmul.mubr.f32.gmra.mrb[0].mxu0 %v57
  %v158 = vpop.f32.mrb[0].mxu0
  %v159 = vadd.f32 0.0, %v158
  %v160 = vpop.f32.mrb[0].mxu0
  %161 = vmatprep.mubr.f32.mxu0 0.0
  %162 = vmatmul.mubr.f32.gmra.mrb[0].mxu0 %v60
  %v163 = vpop.f32.mrb[0].mxu0
  %v164 = vadd.f32 0.0, %v163
  %v165 = vpop.f32.mrb[0].mxu0
  %166 = vdwg.mxu0
  %v167 = vmax.f32 %v129, 0.0
  %v168 = vmax.f32 %v134, 0.0
  %v169 = vmax.f32 %v139, 0.0
  %v170 = vmax.f32 %v144, 0.0
  %v171 = vmax.f32 %v149, 0.0
  %v172 = vmax.f32 %v154, 0.0
  %v173 = vmax.f32 %v159, 0.0
  %v174 = vmax.f32 %v164, 0.0
  %v175 = vlaneseq
  %v176 = vshrl.u32 %v175, 7
  %v177 = vsub.s32 0, %v176
  %v178 = vrot.slane %v36, %v177
  %179 = vmatprep.subr.mxu0 0.0
  %180 = vmatpush1.msra.mxu0 %v20
  %181 = vmatprep.subr.mxu0 0.0
  %182 = vmatpush1.msra.mxu0 %v21
  %183 = vmatprep.subr.mxu0 0.0
  %184 = vmatpush1.msra.mxu0 %v22
  %185 = vmatprep.subr.mxu0 0.0
  %186 = vmatpush1.msra.mxu0 %v23
  %187 = vmatprep.subr.mxu0 0.0
  %188 = vmatpush1.msra.mxu0 %v24
  %189 = vmatprep.subr.mxu0 0.0
  %190 = vmatpush1.msra.mxu0 %v25
  %191 = vmatprep.subr.mxu0 0.0
  %192 = vmatpush1.msra.mxu0 %v26
  %193 = vmatprep.subr.mxu0 0.0
  %194 = vmatpush1.msra.mxu0 %v27
  %195 = vmatprep.subr.mxu0 0.0
  %196 = vmatpush1.msra.mxu0 %v28
  %197 = vmatprep.subr.mxu0 0.0
  %198 = vmatpush1.msra.mxu0 %v29
  %199 = vmatprep.subr.mxu0 0.0
  %200 = vmatpush1.msra.mxu0 %v30
  %201 = vmatprep.subr.mxu0 0.0
  %202 = vmatpush1.msra.mxu0 %v31
  %203 = vmatprep.subr.mxu0 0.0
  %204 = vmatpush1.msra.mxu0 %v32
  %205 = vmatprep.subr.mxu0 0.0
  %206 = vmatpush1.msra.mxu0 %v33
  %207 = vmatprep.subr.mxu0 0.0
  %208 = vmatpush1.msra.mxu0 %v34
  %209 = vmatprep.subr.mxu0 0.0
  %210 = vmatpush1.msra.mxu0 %v35
  %211 = vmatprep.subr.mxu0 0.0
  %212 = vmatpush1.msra.mxu0 0.0
  %213 = vmatprep.subr.mxu0 0.0
  %214 = vmatpush1.msra.mxu0 0.0
  %215 = vmatprep.subr.mxu0 0.0
  %216 = vmatpush1.msra.mxu0 0.0
  %217 = vmatprep.subr.mxu0 0.0
  %218 = vmatpush1.msra.mxu0 0.0
  %219 = vmatprep.subr.mxu0 0.0
  %220 = vmatpush1.msra.mxu0 0.0
  %221 = vmatprep.subr.mxu0 0.0
  %222 = vmatpush1.msra.mxu0 0.0
  %223 = vmatprep.subr.mxu0 0.0
  %224 = vmatpush1.msra.mxu0 0.0
  %225 = vmatprep.subr.mxu0 0.0
  %226 = vmatpush1.msra.mxu0 0.0
  %227 = vmatprep.subr.mxu0 0.0
  %228 = vmatpush1.msra.mxu0 0.0
  %229 = vmatprep.subr.mxu0 0.0
  %230 = vmatpush1.msra.mxu0 0.0
  %231 = vmatprep.subr.mxu0 0.0
  %232 = vmatpush1.msra.mxu0 0.0
  %233 = vmatprep.subr.mxu0 0.0
  %234 = vmatpush1.msra.mxu0 0.0
  %235 = vmatprep.subr.mxu0 0.0
  %236 = vmatpush1.msra.mxu0 0.0
  %237 = vmatprep.subr.mxu0 0.0
  %238 = vmatpush1.msra.mxu0 0.0
  %239 = vmatprep.subr.mxu0 0.0
  %240 = vmatpush1.msra.mxu0 0.0
  %241 = vmatprep.subr.mxu0 0.0
  %242 = vmatpush1.msra.mxu0 0.0
  %243 = vmatprep.mubr.f32.mxu0 0.0
  %244 = vmatmul.mubr.f32.gmra.mrb[0].mxu0 %v167
  %v245 = vpop.f32.mrb[0].mxu0
  %v246 = vadd.f32 %v178, %v245
  %v247 = vpop.f32.mrb[0].mxu0
  %248 = vmatprep.mubr.f32.mxu0 0.0
  %249 = vmatmul.mubr.f32.gmra.mrb[0].mxu0 %v168
  %v250 = vpop.f32.mrb[0].mxu0
  %v251 = vadd.f32 %v178, %v250
  %v252 = vpop.f32.mrb[0].mxu0
  %253 = vmatprep.mubr.f32.mxu0 0.0
  %254 = vmatmul.mubr.f32.gmra.mrb[0].mxu0 %v169
  %v255 = vpop.f32.mrb[0].mxu0
  %v256 = vadd.f32 %v178, %v255
  %v257 = vpop.f32.mrb[0].mxu0
  %258 = vmatprep.mubr.f32.mxu0 0.0
  %259 = vmatmul.mubr.f32.gmra.mrb[0].mxu0 %v170
  %v260 = vpop.f32.mrb[0].mxu0
  %v261 = vadd.f32 %v178, %v260
  %v262 = vpop.f32.mrb[0].mxu0
  %263 = vmatprep.mubr.f32.mxu0 0.0
  %264 = vmatmul.mubr.f32.gmra.mrb[0].mxu0 %v171
  %v265 = vpop.f32.mrb[0].mxu0
  %v266 = vadd.f32 %v178, %v265
  %v267 = vpop.f32.mrb[0].mxu0
  %268 = vmatprep.mubr.f32.mxu0 0.0
  %269 = vmatmul.mubr.f32.gmra.mrb[0].mxu0 %v172
  %v270 = vpop.f32.mrb[0].mxu0
  %v271 = vadd.f32 %v178, %v270
  %v272 = vpop.f32.mrb[0].mxu0
  %273 = vmatprep.mubr.f32.mxu0 0.0
  %274 = vmatmul.mubr.f32.gmra.mrb[0].mxu0 %v173
  %v275 = vpop.f32.mrb[0].mxu0
  %v276 = vadd.f32 %v178, %v275
  %v277 = vpop.f32.mrb[0].mxu0
  %278 = vmatprep.mubr.f32.mxu0 0.0
  %279 = vmatmul.mubr.f32.gmra.mrb[0].mxu0 %v174
  %v280 = vpop.f32.mrb[0].mxu0
  %v281 = vadd.f32 %v178, %v280
  %v282 = vpop.f32.mrb[0].mxu0
  %283 = vdwg.mxu0
  %v284 = vsub.f32 0.0, %v246
  %v285 = vsub.f32 0.0, %v251
  %v286 = vsub.f32 0.0, %v256
  %v287 = vsub.f32 0.0, %v261
  %v288 = vsub.f32 0.0, %v266
  %v289 = vsub.f32 0.0, %v271
  %v290 = vsub.f32 0.0, %v276
  %v291 = vsub.f32 0.0, %v281
  %v292 = vmul.f32 %v284, 1.442695
  %v293 = vpow.pop %v292
  %v294 = vmul.f32 %v285, 1.442695
  %v295 = vpow.pop %v294
  %v296 = vmul.f32 %v286, 1.442695
  %v297 = vpow.pop %v296
  %v298 = vmul.f32 %v287, 1.442695
  %v299 = vpow.pop %v298
  %v300 = vmul.f32 %v288, 1.442695
  %v301 = vpow.pop %v300
  %v302 = vmul.f32 %v289, 1.442695
  %v303 = vpow.pop %v302
  %v304 = vmul.f32 %v290, 1.442695
  %v305 = vpow.pop %v304
  %v306 = vmul.f32 %v291, 1.442695
  %v307 = vpow.pop %v306
  %v308 = vadd.f32 %v293, 1.0
  %v309 = vadd.f32 %v295, 1.0
  %v310 = vadd.f32 %v297, 1.0
  %v311 = vadd.f32 %v299, 1.0
  %v312 = vadd.f32 %v301, 1.0
  %v313 = vadd.f32 %v303, 1.0
  %v314 = vadd.f32 %v305, 1.0
  %v315 = vadd.f32 %v307, 1.0
  %v316 = vrcp.pop %v308
  %v317 = vmul.f32 1.0, %v316
  %v318 = vrcp.pop %v309
  %v319 = vmul.f32 1.0, %v318
  %v320 = vrcp.pop %v310
  %v321 = vmul.f32 1.0, %v320
  %v322 = vrcp.pop %v311
  %v323 = vmul.f32 1.0, %v322
  %v324 = vrcp.pop %v312
  %v325 = vmul.f32 1.0, %v324
  %v326 = vrcp.pop %v313
  %v327 = vmul.f32 1.0, %v326
  %v328 = vrcp.pop %v314
  %v329 = vmul.f32 1.0, %v328
  %v330 = vrcp.pop %v315
  %v331 = vmul.f32 1.0, %v330
  %332 = vst [vmem:[%s2] sm:$0xff] %v317
  %333 = vst [vmem:[%s2 + $0x8] sm:$0xff] %v319
  %334 = vst [vmem:[%s2 + $0x10] sm:$0xff] %v321
  %335 = vst [vmem:[%s2 + $0x18] sm:$0xff] %v323
  %336 = vst [vmem:[%s2 + $0x20] sm:$0xff] %v325
  %337 = vst [vmem:[%s2 + $0x28] sm:$0xff] %v327
  %338 = vst [vmem:[%s2 + $0x30] sm:$0xff] %v329
  %339 = vst [vmem:[%s2 + $0x38] sm:$0xff] %v331
  // Predicated region
  $region10: #{forward.1} parent=0 // pred_check
    _
  $region11: #{forward.1} parent=0 // pred_check_branch
    %341 = sbr.rel (0) target = $region13
  $region12: #{forward.1} parent=0 // pred_region
    _
  $region13: #{forward.1} parent=0 // pred_fallthru
    _
  // Predicated region
  $region14: #{forward.1} parent=0 // pred_check
    _
  $region15: #{forward.1} parent=0 // pred_check_branch
    %343 = sbr.rel (0) target = $region17
  $region16: #{forward.1} parent=0 // pred_region
    _
  $region17: #{forward.1} parent=0 // pred_fallthru
    _

</llo_original>
